<compile_context>
chip_gen: v7x
topology: tpu7x:2x2x1
jax: 0.10.0
libtpu: 0.0.40
codegen_flags: <defaults>
</compile_context>

<pallas_src>
import functools

import jax
import jax.numpy as jnp
from jax.experimental import pallas as pl
from jax.experimental.pallas import tpu as pltpu


def chomp1d_kernel(x_ref, out_ref, *, l_out):
    # x_ref: [TR, L], out_ref: [TR, L_out]; static slice drops the chomped tail.
    out_ref[...] = x_ref[:, :l_out]


def chomp1d(x, chomp_size):
    """x: [B, C, L]  ->  x[:, :, :L - chomp_size] as a contiguous new array."""
    assert chomp_size > 0, "chomp_size must be positive"
    B, C, L = x.shape
    L_out = L - chomp_size
    assert L_out > 0, "chomp_size must be smaller than the last dimension"

    # The op is independent per (batch, channel) row -> flatten to one row axis
    # so a single grid step can process many rows (amortizes grid overhead and
    # keeps DMA/stores as wide as the op's output allows).
    R = B * C
    x2 = x.reshape(R, L)

    # Pick a row tile that keeps the double-buffered (input + output) blocks
    # comfortably inside scoped VMEM on all generations (v7x has only 64 MiB
    # physical / 32 MiB default scoped).
    bytes_per_row = (L + L_out) * x.dtype.itemsize
    vmem_budget = 8 * 1024 * 1024                      # per-buffer budget
    max_rows = max(1, vmem_budget // max(1, bytes_per_row))
    tr = min(R, max_rows, 4096)
    if tr < R:
        tr = max(8, (tr // 8) * 8)                     # sublane-aligned tiles

    grid = (pl.cdiv(R, tr),)

    out2 = pl.pallas_call(
        functools.partial(chomp1d_kernel, l_out=L_out),
        out_shape=jax.ShapeDtypeStruct((R, L_out), x.dtype),
        grid_spec=pltpu.PrefetchScalarGridSpec(
            num_scalar_prefetch=0,
            grid=grid,
            # Input block keeps the full last dim L (== array dim), output block
            # keeps the full last dim L_out (== array dim): no (8,128) issues
            # even when L_out is not a multiple of 128.
            in_specs=[pl.BlockSpec((tr, L), lambda i: (i, 0))],
            out_specs=pl.BlockSpec((tr, L_out), lambda i: (i, 0)),
        ),
        compiler_params=pltpu.CompilerParams(
            # Row tiles are independent -> parallel (feeds both TCs on v7x).
            dimension_semantics=("parallel",),
        ),
    )(x2)

    return out2.reshape(B, C, L_out)


def reference_jax(x, chomp_size):
    """Pure-JAX reference mirroring the PyTorch forward exactly."""
    return x[:, :, :-chomp_size]


if __name__ == "__main__":
    B, C, L = 2, 4, 16
    chomp_size = 4

    key = jax.random.PRNGKey(0)
    x = jax.random.normal(key, (B, C, L), dtype=jnp.float32)

    out = chomp1d(x, chomp_size)
    out = jax.block_until_ready(out)

    ref = reference_jax(x, chomp_size)
    assert out.shape == (B, C, L - chomp_size), f"bad shape {out.shape}"
    assert jnp.array_equal(out, ref), "mismatch vs reference"

    print("KERNEL_OK")
</pallas_src>

<mosaic_0001>
module attributes {stable_mosaic.version = 11 : i64} {
  func.func @chomp1d_kernel(%arg0: i32, %arg1: memref<8x16xf32, #tpu.memory_space<vmem>>, %arg2: memref<8x12xf32, #tpu.memory_space<vmem>>) attributes {dimension_semantics = [#tpu.dimension_semantics<parallel>], iteration_bounds = array<i64: 1>, scalar_prefetch = 0 : i64, scratch_operands = 0 : i64, tpu.core_type = #tpu.core_type<tc>, window_params = [{transform_indices = @transform_0, window_bounds = array<i64: 8, 16>}, {transform_indices = @transform_1, window_bounds = array<i64: 8, 12>}]} {
    %c0 = arith.constant 0 : index
    %c0_0 = arith.constant 0 : index
    %0 = vector.load %arg1[%c0, %c0_0] : memref<8x16xf32, #tpu.memory_space<vmem>>, vector<8x12xf32>
    %c0_1 = arith.constant 0 : index
    %c0_2 = arith.constant 0 : index
    %1 = vector.load %arg2[%c0_1, %c0_2] : memref<8x12xf32, #tpu.memory_space<vmem>>, vector<8x12xf32>
    tpu.vector_store %arg2[%c0_1, %c0_2], %0 {strides = array<i32>} : memref<8x12xf32, #tpu.memory_space<vmem>>, vector<8x12xf32>,
    return
  }
  func.func @transform_0(%arg0: i32) -> (i32, i32) {
    %c0_i32 = arith.constant 0 : i32
    %c0_i32_0 = arith.constant 0 : i32
    return %arg0, %c0_i32 : i32, i32
  }
  func.func @transform_1(%arg0: i32) -> (i32, i32) {
    %c0_i32 = arith.constant 0 : i32
    %c0_i32_0 = arith.constant 0 : i32
    return %arg0, %c0_i32 : i32, i32
  }
}

</mosaic_0001>

<llo_original>
// kernel: tpu_custom_call.1
$region0: #{tpu_custom_call.1}
  #allocation0 [shape = 'u32[]', space=smem, size = 0x4, offset = 0x4, fixed_abs, tag = 'smem constant byte address 0x4 - core index']
  #allocation1 [shape = 'u32[144,128]{1,0:T(1,128)}', space=vmem, size = 0x12000, scoped, tag = 'internal scratch']
  %s0 = inlined_call_operand.hbm [shape: f32[8,16], index: 0, kind: input, shape index: {}]
  %s1 = inlined_call_operand.hbm [shape: f32[8,12], index: 1, kind: output, shape index: {}]
  %s2 = sld [smem:[#allocation0]]
  $region18: #{tpu_custom_call.1} parent=0
    _
  %s4 = ssub.s32 1, %s2
  %s5 = scalar_select 0, %s4, %s2
  $region1: #{tpu_custom_call.1} parent=0
    #allocation2 [shape = 'u8[4096]{0}', space=vmem, size = 0x1000, scoped, tag = 'input window, operand 0, single buffered']
    #allocation3 [shape = 's32[1]{0}', space=sflag, size = 0x4, scoped, tag = 'scoped memory for tpu_custom_call.1']
    #allocation4 [shape = 's32[1]{0}', space=sflag, size = 0x4, scoped, tag = 'scoped memory for tpu_custom_call.1']
    #allocation5 [shape = 'u8[4096]{0}', space=vmem, size = 0x1000, scoped, tag = 'output window, operand 0, single buffered']
    %6 = vsyncpa [#allocation3], 0
    %7 = vsyncpa [#allocation4], 0
    // Predicated region
    $region2: #{tpu_custom_call.1} parent=1 // pred_check
      _
    $region3: #{tpu_custom_call.1} parent=1 // pred_check_branch
      %9 = sbr.rel (0) target = $region5
    $region4: #{tpu_custom_call.1} parent=1 // pred_region
      %s11 = ssub.s32 128, 128
      %12 = vsyncadd [#allocation3], %s11
      %s14 = sshll.u32 [#allocation2], 4
      %s15 = int_to_ptr.vmem [resolvable:$true] %s14
      %17 = dma.hbm_to_vmem [thread:$0]  %s0, 128, %s15, [#allocation3]
    $region5: #{tpu_custom_call.1} parent=1 // pred_fallthru
      _
    // Predicated region
    $region6: #{tpu_custom_call.1} parent=1 // pred_check
      _
    $region7: #{tpu_custom_call.1} parent=1 // pred_check_branch
      %19 = sbr.rel (0) target = $region9
    $region8: #{tpu_custom_call.1} parent=1 // pred_region
      %20 = dma.done [#allocation3], 128
    $region9: #{tpu_custom_call.1} parent=1 // pred_fallthru
      _
    %v21 = vld [vmem:[#allocation2] sm:$0xff]
    %vm22 = vcmask 97280
    %23 = vst.msk [vmem:[#allocation5] sm:$0xff] %vm22, %v21
    // Predicated region
    $region10: #{tpu_custom_call.1} parent=1 // pred_check
      _
    $region11: #{tpu_custom_call.1} parent=1 // pred_check_branch
      %25 = sbr.rel (0) target = $region13
    $region12: #{tpu_custom_call.1} parent=1 // pred_region
      %s27 = ssub.s32 128, 128
      %28 = vsyncadd [#allocation4], %s27
      %s30 = sshll.u32 [#allocation5], 4
      %s31 = int_to_ptr.vmem [resolvable:$true] %s30
      %33 = dma.vmem_to_hbm [thread:$0]  %s31, 128, %s1, [#allocation4]
    $region13: #{tpu_custom_call.1} parent=1 // pred_fallthru
      _
    // Predicated region
    $region14: #{tpu_custom_call.1} parent=1 // pred_check
      _
    $region15: #{tpu_custom_call.1} parent=1 // pred_check_branch
      %35 = sbr.rel (0) target = $region17
    $region16: #{tpu_custom_call.1} parent=1 // pred_region
      %36 = dma.done [#allocation4], 128
    $region17: #{tpu_custom_call.1} parent=1 // pred_fallthru
      _
    %37 = vsyncpa [#allocation3], 1
    %38 = vsyncpa [#allocation4], 1

</llo_original>
